<compile_context>
chip_gen: v7x
topology: tpu7x:2x2x1
jax: 0.10.0
libtpu: 0.0.40
codegen_flags: <defaults>
</compile_context>

<pallas_src>
import functools
import math

import numpy as np

import jax
import jax.numpy as jnp
from jax import lax
from jax.experimental import pallas as pl
from jax.experimental.pallas import tpu as pltpu


def _upsample_matmul_kernel(src_ref, x_ref, o_ref):
    """One MXU matmul performs both the H- and W-replication for this block of rows."""
    x = x_ref[...]                                   # (rb, in_cols), bf16 or f32
    src = src_ref[...]                               # (1, out_cols) int32 source-column ids
    in_cols = x_ref.shape[1]
    out_cols = src_ref.shape[1]
    # Rebuild the 0/1 replication matrix on the VPU (one iota + one compare + one cast);
    # exactly one 1.0 per column, so the matmul is a bit-exact copy for finite values.
    row = lax.broadcasted_iota(jnp.int32, (in_cols, out_cols), 0)
    m = (row == src).astype(x.dtype)
    y = jnp.dot(x, m, preferred_element_type=jnp.float32)
    o_ref[...] = y.astype(o_ref.dtype)


def _divisors(n):
    ds = set()
    i = 1
    while i * i <= n:
        if n % i == 0:
            ds.add(i)
            ds.add(n // i)
        i += 1
    return sorted(ds)


@functools.lru_cache(maxsize=None)
def _src_index_row(G, W, s):
    """Cached (1, G*W*s*s) int32 map: output column -> source input column."""
    col = np.arange(G * W * s * s, dtype=np.int64)
    g = col // (s * s * W)                           # which of the G source rows
    wo = col % (s * W)                               # output column inside that row
    src = g * W + wo // s                            # source input column
    return np.asarray(src, dtype=np.int32).reshape(1, -1)


def _pick_group(n_rows, W, s, esz, m_cap_bytes=1 << 20):
    """G = #consecutive (n,c,h) rows fused per matmul row.

    Wants G*W >= 128 (lane-dense), the materialized matrix <= m_cap_bytes (also bounds
    the matmul K on v5e), and prefers out_cols = G*W*s*s to be a multiple of 128 so the
    output stores are unmasked full-width.
    """
    g_min = -(-128 // W)                              # ceil(128 / W)
    per = W * W * s * s * esz                         # matrix bytes for G == 1
    if per > m_cap_bytes:
        return None
    g_max = math.isqrt(m_cap_bytes // per)
    if g_max < g_min:
        return None
    cand = [d for d in _divisors(n_rows) if g_min <= d <= g_max]
    if not cand:
        return None
    aligned = [d for d in cand if (d * W * s * s) % 128 == 0]
    return aligned[0] if aligned else cand[0]


def _pick_rb(rows, per_row_bytes, sub, target_bytes=4 << 20):
    """Row-block size: ~target_bytes of (in+out) per step, sublane-aligned, >=2 steps."""
    cap = max(1, target_bytes // per_row_bytes)
    if rows >= 2:
        cap = min(cap, (rows + 1) // 2)               # >= 2 grid steps for v7x megacore
    cap = min(cap, rows)
    if cap >= rows:
        return rows                                   # single full block
    divs = [d for d in _divisors(rows) if d <= cap and d % sub == 0]
    if divs and divs[-1] * 2 > cap:
        return divs[-1]                               # even split, no ragged last block
    if cap >= sub:
        return (cap // sub) * sub                     # ragged last block, sublane-aligned
    return min(rows, sub)


def upsample_nearest(x: jax.Array, scale_factor, mode: str = "nearest") -> jax.Array:
    """Equivalent of F.interpolate(x, scale_factor=scale_factor, mode='nearest') for NCHW."""
    if mode != "nearest":
        raise NotImplementedError("only mode='nearest' (as used by YOLOv3) is implemented")
    s = int(scale_factor)
    if float(scale_factor) != float(s) or s < 1:
        # TODO(synk): fractional scale factors need the floor(out_idx * in/out) index map.
        raise NotImplementedError("only positive integer scale factors are supported")
    if s == 1:
        return x

    N, C, H, W = x.shape

    if not (x.dtype == jnp.float32 or x.dtype == jnp.bfloat16):
        # TODO(synk): integer / other float dtypes take the exact XLA repeat path; the
        # 0/1-matmul path is only used for f32/bf16 where it is bit-exact.
        return jnp.repeat(jnp.repeat(x, s, axis=2), s, axis=3)

    esz = jnp.dtype(x.dtype).itemsize
    sub = {4: 8, 2: 16, 1: 32}.get(esz, 8)            # sublane tile for this dtype
    n_rows = N * C * H                                # every (n, c, h) row is independent

    G = _pick_group(n_rows, W, s, esz)
    if G is None:
        # TODO(synk): no lane-dense row grouping exists for this shape -> exact XLA repeat.
        return jnp.repeat(jnp.repeat(x, s, axis=2), s, axis=3)

    rows = n_rows // G
    in_cols = G * W
    out_cols = in_cols * s * s

    per_row_bytes = (in_cols + out_cols) * esz
    rb = _pick_rb(rows, per_row_bytes, sub)
    grid = (pl.cdiv(rows, rb),)

    xg = x.reshape(rows, in_cols)                     # free: contiguous merge
    src = _src_index_row(G, W, s)                     # cached tiny int32 index row

    out = pl.pallas_call(
        _upsample_matmul_kernel,
        out_shape=jax.ShapeDtypeStruct((rows, out_cols), x.dtype),
        grid_spec=pltpu.PrefetchScalarGridSpec(
            num_scalar_prefetch=0,
            grid=grid,
            in_specs=[
                pl.BlockSpec((1, out_cols), lambda i: (0, 0)),    # src ids: tiny, constant
                pl.BlockSpec((rb, in_cols), lambda i: (i, 0)),    # payload rows
            ],
            out_specs=pl.BlockSpec((rb, out_cols), lambda i: (i, 0)),
        ),
        compiler_params=pltpu.CompilerParams(
            dimension_semantics=("parallel",),
            vmem_limit_bytes=32 * 1024 * 1024,
        ),
        cost_estimate=pl.CostEstimate(
            flops=2 * rows * in_cols * out_cols,
            transcendentals=0,
            bytes_accessed=rows * (in_cols + out_cols) * esz + out_cols * 4,
        ),
    )(src, xg)

    return out.reshape(N, C, H * s, W * s)            # free: contiguous split


if __name__ == "__main__":
    # Upsample has no learnable parameters (scale_factor=2, mode='nearest' in YOLOv3).
    key = jax.random.PRNGKey(0)
    scale = 2

    # f32 path
    x = jax.random.normal(key, (2, 4, 16, 16), dtype=jnp.float32)
    out = jax.block_until_ready(upsample_nearest(x, scale))
    ref = jnp.repeat(jnp.repeat(x, scale, axis=2), scale, axis=3)
    assert out.shape == (2, 4, 32, 32)
    assert out.dtype == x.dtype
    assert jnp.allclose(out, ref), "f32 mismatch vs reference"

    # bf16 path (common YOLO inference dtype): bf16 MXU operands, bit-exact
    xb = x.astype(jnp.bfloat16)
    outb = jax.block_until_ready(upsample_nearest(xb, scale))
    refb = jnp.repeat(jnp.repeat(xb, scale, axis=2), scale, axis=3)
    assert outb.dtype == jnp.bfloat16
    assert bool(jnp.all(outb == refb)), "bf16 mismatch vs reference"

    # YOLO-like odd spatial size (13x13) exercises the lane-dense grouping path
    x2 = jax.random.normal(jax.random.PRNGKey(1), (1, 3, 13, 13), dtype=jnp.float32)
    out2 = jax.block_until_ready(upsample_nearest(x2, scale))
    ref2 = jnp.repeat(jnp.repeat(x2, scale, axis=2), scale, axis=3)
    assert out2.shape == (1, 3, 26, 26)
    assert jnp.allclose(out2, ref2), "13x13 mismatch vs reference"

    print("KERNEL_OK")
</pallas_src>

<mosaic_0001>
module attributes {stable_mosaic.version = 11 : i64} {
  func.func @_upsample_matmul_kernel(%arg0: i32, %arg1: memref<1x512xi32, #tpu.memory_space<vmem>>, %arg2: memref<8x128xf32, #tpu.memory_space<vmem>>, %arg3: memref<8x512xf32, #tpu.memory_space<vmem>>) attributes {dimension_semantics = [#tpu.dimension_semantics<parallel>], iteration_bounds = array<i64: 2>, scalar_prefetch = 0 : i64, scratch_operands = 0 : i64, tpu.core_type = #tpu.core_type<tc>, window_params = [{pipeline_mode = #tpu.pipeline_mode<synchronous>, transform_indices = @transform_0, window_bounds = array<i64: 1, 512>}, {transform_indices = @transform_1, window_bounds = array<i64: 8, 128>}, {transform_indices = @transform_2, window_bounds = array<i64: 8, 512>}]} {
    %c0 = arith.constant 0 : index
    %c0_0 = arith.constant 0 : index
    %0 = vector.load %arg2[%c0, %c0_0] : memref<8x128xf32, #tpu.memory_space<vmem>>, vector<8x128xf32>
    %c0_1 = arith.constant 0 : index
    %c0_2 = arith.constant 0 : index
    %1 = vector.load %arg1[%c0_1, %c0_2] : memref<1x512xi32, #tpu.memory_space<vmem>>, vector<1x512xi32>
    %2 = tpu.iota {dimensions = array<i32: 0>} : vector<128x512xi32>
    %3 = vector.broadcast %1 : vector<1x512xi32> to vector<128x512xi32>
    %4 = arith.cmpi eq, %2, %3 : vector<128x512xi32>
    %5 = arith.extui %4 : vector<128x512xi1> to vector<128x512xi32>
    %6 = arith.sitofp %5 : vector<128x512xi32> to vector<128x512xf32>
    %cst = arith.constant dense<0.000000e+00> : vector<8x512xf32>
    %7 = tpu.matmul %0, %6, %cst {dimension_numbers = #tpu.dot_dimension_numbers<[1], [0], [0], [1], [0, 0, 1, 1], [], []>} : vector<8x128xf32>, vector<128x512xf32>, vector<8x512xf32> -> vector<8x512xf32>
    %c0_3 = arith.constant 0 : index
    %c0_4 = arith.constant 0 : index
    %8 = vector.load %arg3[%c0_3, %c0_4] : memref<8x512xf32, #tpu.memory_space<vmem>>, vector<8x512xf32>
    tpu.vector_store %arg3[%c0_3, %c0_4], %7 {strides = array<i32>} : memref<8x512xf32, #tpu.memory_space<vmem>>, vector<8x512xf32>,
    return
  }
  func.func @transform_0(%arg0: i32) -> (i32, i32) {
    %c0_i32 = arith.constant 0 : i32
    %c0_i32_0 = arith.constant 0 : i32
    %c0_i32_1 = arith.constant 0 : i32
    return %c0_i32, %c0_i32_0 : i32, i32
  }
  func.func @transform_1(%arg0: i32) -> (i32, i32) {
    %c0_i32 = arith.constant 0 : i32
    %c0_i32_0 = arith.constant 0 : i32
    return %arg0, %c0_i32 : i32, i32
  }
  func.func @transform_2(%arg0: i32) -> (i32, i32) {
    %c0_i32 = arith.constant 0 : i32
    %c0_i32_0 = arith.constant 0 : i32
    return %arg0, %c0_i32 : i32, i32
  }
}

</mosaic_0001>

<llo_original>
// kernel: tpu_custom_call.1
$region0: #{tpu_custom_call.1}
  #allocation0 [shape = 'u32[]', space=smem, size = 0x4, offset = 0x4, fixed_abs, tag = 'smem constant byte address 0x4 - core index']
  #allocation1 [shape = 'u32[144,128]{1,0:T(1,128)}', space=vmem, size = 0x12000, scoped, tag = 'internal scratch']
  %s0 = inlined_call_operand.hbm [shape: s32[1,512], index: 0, kind: input, shape index: {}]
  %s1 = inlined_call_operand.hbm [shape: f32[16,128], index: 1, kind: input, shape index: {}]
  %s2 = inlined_call_operand.hbm [shape: f32[16,512], index: 2, kind: output, shape index: {}]
  %s3 = sld [smem:[#allocation0]]
  $region49: #{tpu_custom_call.1} parent=0
    _
  %s5 = ssub.s32 1, %s3
  %s6 = scalar_select 0, %s5, %s3
  $region1: #{tpu_custom_call.1} parent=0
    #allocation2 [shape = 'u8[2048]{0}', space=vmem, size = 0x800, scoped, tag = 'input window, operand 0, single buffered']
    #allocation3 [shape = 's32[2]{0}', space=sflag, size = 0x8, scoped, tag = 'scoped memory for tpu_custom_call.1']
    #allocation4 [shape = 's32[2]{0}', space=sflag, size = 0x8, scoped, tag = 'scoped memory for tpu_custom_call.1']
    #allocation5 [shape = 'u8[8192]{0}', space=vmem, size = 0x2000, scoped, tag = 'input window, operand 1']
    #allocation6 [shape = 's32[2]{0}', space=sflag, size = 0x8, scoped, tag = 'scoped memory for tpu_custom_call.1']
    #allocation7 [shape = 'u8[32768]{0}', space=vmem, size = 0x8000, scoped, tag = 'output window, operand 0']
    %7 = vsyncpa [#allocation3], 0
    %8 = vsyncpa [#allocation6], 0
    %s9 = scalar_lea.sflag [#allocation6], 1
    %10 = vsyncpa %s9, 0
    %11 = vsyncpa [#allocation4], 0
    %s12 = scalar_lea.sflag [#allocation4], 1
    %13 = vsyncpa %s12, 0
    loop: start=0, step=1, limit=4
    $region2: #{tpu_custom_call.1} parent=1 // loop_pre_header
      _
    $region3: #{tpu_custom_call.1} parent=1 // loop_header
      %s15 = sphi 0, %s19
      %p16 = scmp.ge.s32.totalorder %s15, 4
      %s23 = sphi 0, %s23
      %s25 = sphi 0, %s23
      %s26 = sphi 0, %s25
      %s40 = sphi 0, %s26
      %s46 = sphi 0, %s48
      %s49 = sphi 0, %s46
      %s50 = sphi 0, %s49
      %s66 = sphi 0, %s50
      %s72 = sphi 0, %s74
      %s75 = sphi 0, %s72
      %s76 = sphi 0, %s75
      %s92 = sphi 0, %s76
    $region4: #{tpu_custom_call.1} parent=1 // loop_header_branch
      %18 = sbr.rel (%p16) target = $region8
    $region5: #{tpu_custom_call.1} parent=1 // loop_body
      %s20 = ssub.s32 %s15, 1
      %s21 = ssub.s32 %s15, 2
      %s22 = sadd.s32 %s15, 1
      %s24 = sadd.s32 %s23, 1
      %p27 = scmp.eq.s32.totalorder %s15, 1
      %p28 = scmp.ne.s32.totalorder %s23, %s25
      %p29 = scmp.eq.s32.totalorder %s15, 0
      %p30 = por %p28, %p29
      %p31 = scmp.ne.s32.totalorder %s23, %s25
      %p32 = scmp.eq.s32.totalorder %s20, 1
      %p33 = por %p31, %p32
      %p34 = scmp.ne.s32.totalorder %s25, %s26
      %p35 = scmp.eq.s32.totalorder %s20, 0
      %p36 = por %p34, %p35
      %p37 = scmp.ne.s32.totalorder %s25, %s26
      %p38 = scmp.eq.s32.totalorder %s21, 1
      %p39 = por %p37, %p38
      %p41 = scmp.ne.s32.totalorder %s26, %s40
      %p42 = scmp.eq.s32.totalorder %s21, 0
      %p43 = por %p41, %p42
      %s44 = ssub.s32 %s15, %s22
      %p45 = scmp.eq.s32.totalorder %s44, 0
      %s47 = sadd.s32 %s46, 1
      %s48 = scalar_select %p45, %s46, %s47
      %p51 = pneg %p45
      %p52 = scmp.eq.s32.totalorder %s15, 1
      %p53 = por %p51, %p52
      %p54 = scmp.ne.s32.totalorder %s46, %s49
      %p55 = scmp.eq.s32.totalorder %s15, 0
      %p56 = por %p54, %p55
      %p57 = scmp.ne.s32.totalorder %s46, %s49
      %p58 = scmp.eq.s32.totalorder %s20, 1
      %p59 = por %p57, %p58
      %p60 = scmp.ne.s32.totalorder %s49, %s50
      %p61 = scmp.eq.s32.totalorder %s20, 0
      %p62 = por %p60, %p61
      %p63 = scmp.ne.s32.totalorder %s49, %s50
      %p64 = scmp.eq.s32.totalorder %s21, 1
      %p65 = por %p63, %p64
      %p67 = scmp.ne.s32.totalorder %s50, %s66
      %p68 = scmp.eq.s32.totalorder %s21, 0
      %p69 = por %p67, %p68
      %s70 = ssub.s32 %s15, %s22
      %p71 = scmp.eq.s32.totalorder %s70, 0
      %s73 = sadd.s32 %s72, 1
      %s74 = scalar_select %p71, %s72, %s73
      %p77 = pneg %p71
      %p78 = scmp.eq.s32.totalorder %s15, 1
      %p79 = por %p77, %p78
      %p80 = scmp.ne.s32.totalorder %s72, %s75
      %p81 = scmp.eq.s32.totalorder %s15, 0
      %p82 = por %p80, %p81
      %p83 = scmp.ne.s32.totalorder %s72, %s75
      %p84 = scmp.eq.s32.totalorder %s20, 1
      %p85 = por %p83, %p84
      %p86 = scmp.ne.s32.totalorder %s75, %s76
      %p87 = scmp.eq.s32.totalorder %s20, 0
      %p88 = por %p86, %p87
      %p89 = scmp.ne.s32.totalorder %s75, %s76
      %p90 = scmp.eq.s32.totalorder %s21, 1
      %p91 = por %p89, %p90
      %p93 = scmp.ne.s32.totalorder %s76, %s92
      %p94 = scmp.eq.s32.totalorder %s21, 0
      %p95 = por %p93, %p94
      %p96 = scmp.le.s32.totalorder 1, %s15
      %p97 = scmp.lt.s32.totalorder %s15, 3
      %p98 = pnand %p96, %p97
      %p99 = pneg %p98
      // Predicated region
      $region9: #{tpu_custom_call.1} parent=5 // pred_check
        _
      $region10: #{tpu_custom_call.1} parent=5 // pred_check_branch
        %101 = sbr.rel (%p98) target = $region12
      $region11: #{tpu_custom_call.1} parent=5 // pred_region
        %s102 = ssub.s32 %s15, 1
        // Predicated region
        $region13: #{tpu_custom_call.1} parent=11 // pred_check
          %p103 = pneg %p36
        $region14: #{tpu_custom_call.1} parent=11 // pred_check_branch
          %105 = sbr.rel (%p103) target = $region16
        $region15: #{tpu_custom_call.1} parent=11 // pred_region
          %s107 = ssub.s32 64, 64
          %108 = vsyncadd [#allocation3], %s107
          %s110 = sshll.u32 [#allocation2], 4
          %s111 = int_to_ptr.vmem [resolvable:$true] %s110
          %113 = dma.hbm_to_vmem [thread:$0]  %s0, 64, %s111, [#allocation3]
        $region16: #{tpu_custom_call.1} parent=11 // pred_fallthru
          _
      $region12: #{tpu_custom_call.1} parent=5 // pred_fallthru
        _
      %p114 = scmp.lt.s32.totalorder %s15, 2
      // Predicated region
      $region17: #{tpu_custom_call.1} parent=5 // pred_check
        %p115 = pneg %p114
      $region18: #{tpu_custom_call.1} parent=5 // pred_check_branch
        %117 = sbr.rel (%p115) target = $region20
      $region19: #{tpu_custom_call.1} parent=5 // pred_region
        // Predicated region
        $region21: #{tpu_custom_call.1} parent=19 // pred_check
          %p118 = pneg %p56
        $region22: #{tpu_custom_call.1} parent=19 // pred_check_branch
          %120 = sbr.rel (%p118) target = $region24
        $region23: #{tpu_custom_call.1} parent=19 // pred_region
          %s121 = sand.u32 %s46, 1
          %s122 = scalar_lea.sflag [#allocation6], %s121
          %s123 = sand.u32 %s46, 1
          %s124 = smul.addr %s123, 8
          %s125 = scalar_lea.vmem [#allocation5], %s124
          %s127 = ssub.s32 128, 128
          %128 = vsyncadd %s122, %s127
          %s129 = smul.addr %s15, 128
          %s130 = scalar_lea.hbm %s1, %s129
          %s132 = sshll.u32 %s125, 4
          %s133 = int_to_ptr.vmem [resolvable:$true] %s132
          %135 = dma.hbm_to_vmem [thread:$0]  %s130, 128, %s133, %s122
        $region24: #{tpu_custom_call.1} parent=19 // pred_fallthru
          _
      $region20: #{tpu_custom_call.1} parent=5 // pred_fallthru
        _
      %p136 = scmp.le.s32.totalorder 1, %s15
      %p137 = scmp.lt.s32.totalorder %s15, 3
      %p138 = pnand %p136, %p137
      %p139 = pneg %p138
      // Predicated region
      $region25: #{tpu_custom_call.1} parent=5 // pred_check
        _
      $region26: #{tpu_custom_call.1} parent=5 // pred_check_branch
        %141 = sbr.rel (%p138) target = $region28
      $region27: #{tpu_custom_call.1} parent=5 // pred_region
        %s142 = ssub.s32 %s15, 1
        // Predicated region
        $region29: #{tpu_custom_call.1} parent=27 // pred_check
          %p143 = pneg %p36
        $region30: #{tpu_custom_call.1} parent=27 // pred_check_branch
          %145 = sbr.rel (%p143) target = $region32
        $region31: #{tpu_custom_call.1} parent=27 // pred_region
          %146 = dma.done [#allocation3], 64
        $region32: #{tpu_custom_call.1} parent=27 // pred_fallthru
          _
        %s147 = sand.u32 %s49, 1
        %s148 = scalar_lea.sflag [#allocation6], %s147
        %s149 = sand.u32 %s49, 1
        %s150 = smul.addr %s149, 8
        %s151 = scalar_lea.vmem [#allocation5], %s150
        // Predicated region
        $region33: #{tpu_custom_call.1} parent=27 // pred_check
          %p152 = pneg %p62
        $region34: #{tpu_custom_call.1} parent=27 // pred_check_branch
          %154 = sbr.rel (%p152) target = $region36
        $region35: #{tpu_custom_call.1} parent=27 // pred_region
          %155 = dma.done %s148, 128
        $region36: #{tpu_custom_call.1} parent=27 // pred_fallthru
          _
        %p156 = pneg %p36
        %p157 = pneg %p33
        %s158 = sand.u32 %s49, 1
        %s159 = scalar_lea.sflag [#allocation6], %s158
        %s160 = sand.u32 %s49, 1
        %s161 = smul.addr %s160, 8
        %s162 = scalar_lea.vmem [#allocation5], %s161
        %p163 = pneg %p62
        %p164 = pneg %p59
        %p165 = pneg %p88
        %p166 = pneg %p85
        %s167 = sand.u32 %s75, 1
        %s168 = scalar_lea.sflag [#allocation4], %s167
        %s169 = sand.u32 %s75, 1
        %s170 = smul.addr %s169, 32
        %s171 = scalar_lea.vmem [#allocation7], %s170
        %v172 = vld [vmem:[%s151] sm:$0xff]
        %v173 = vld [vmem:[#allocation2] sm:$0xf]
        %v174 = vlaneseq
        %v175 = vshrl.u32 %v174, 7
        %v176 = vadd.s32 %v175, 8
        %v177 = vadd.s32 %v175, 16
        %v178 = vadd.s32 %v175, 24
        %v179 = vadd.s32 %v175, 32
        %v180 = vadd.s32 %v175, 40
        %v181 = vadd.s32 %v175, 48
        %v182 = vadd.s32 %v175, 56
        %v183 = vadd.s32 %v175, 64
        %v184 = vadd.s32 %v175, 72
        %v185 = vadd.s32 %v175, 80
        %v186 = vadd.s32 %v175, 88
        %v187 = vadd.s32 %v175, 96
        %v188 = vadd.s32 %v175, 104
        %v189 = vadd.s32 %v175, 112
        %v190 = vadd.s32 %v175, 120
        %v191 = vlaneseq
        %v192 = vshrl.u32 %v191, 7
        %v193 = vsub.s32 0, %v192
        %v194 = vrot.slane %v173, %v193
        %v195 = vlaneseq
        %v196 = vshrl.u32 %v195, 7
        %v197 = vsub.s32 1, %v196
        %v198 = vrot.slane %v173, %v197
        %v199 = vlaneseq
        %v200 = vshrl.u32 %v199, 7
        %v201 = vsub.s32 2, %v200
        %v202 = vrot.slane %v173, %v201
        %v203 = vlaneseq
        %v204 = vshrl.u32 %v203, 7
        %v205 = vsub.s32 3, %v204
        %v206 = vrot.slane %v173, %v205
        %vm207 = vcmp.eq.s32.totalorder %v175, %v194
        %vm208 = vcmp.eq.s32.totalorder %v175, %v198
        %vm209 = vcmp.eq.s32.totalorder %v175, %v202
        %vm210 = vcmp.eq.s32.totalorder %v175, %v206
        %vm211 = vcmp.eq.s32.totalorder %v176, %v194
        %vm212 = vcmp.eq.s32.totalorder %v176, %v198
        %vm213 = vcmp.eq.s32.totalorder %v176, %v202
        %vm214 = vcmp.eq.s32.totalorder %v176, %v206
        %vm215 = vcmp.eq.s32.totalorder %v177, %v194
        %vm216 = vcmp.eq.s32.totalorder %v177, %v198
        %vm217 = vcmp.eq.s32.totalorder %v177, %v202
        %vm218 = vcmp.eq.s32.totalorder %v177, %v206
        %vm219 = vcmp.eq.s32.totalorder %v178, %v194
        %vm220 = vcmp.eq.s32.totalorder %v178, %v198
        %vm221 = vcmp.eq.s32.totalorder %v178, %v202
        %vm222 = vcmp.eq.s32.totalorder %v178, %v206
        %vm223 = vcmp.eq.s32.totalorder %v179, %v194
        %vm224 = vcmp.eq.s32.totalorder %v179, %v198
        %vm225 = vcmp.eq.s32.totalorder %v179, %v202
        %vm226 = vcmp.eq.s32.totalorder %v179, %v206
        %vm227 = vcmp.eq.s32.totalorder %v180, %v194
        %vm228 = vcmp.eq.s32.totalorder %v180, %v198
        %vm229 = vcmp.eq.s32.totalorder %v180, %v202
        %vm230 = vcmp.eq.s32.totalorder %v180, %v206
        %vm231 = vcmp.eq.s32.totalorder %v181, %v194
        %vm232 = vcmp.eq.s32.totalorder %v181, %v198
        %vm233 = vcmp.eq.s32.totalorder %v181, %v202
        %vm234 = vcmp.eq.s32.totalorder %v181, %v206
        %vm235 = vcmp.eq.s32.totalorder %v182, %v194
        %vm236 = vcmp.eq.s32.totalorder %v182, %v198
        %vm237 = vcmp.eq.s32.totalorder %v182, %v202
        %vm238 = vcmp.eq.s32.totalorder %v182, %v206
        %vm239 = vcmp.eq.s32.totalorder %v183, %v194
        %vm240 = vcmp.eq.s32.totalorder %v183, %v198
        %vm241 = vcmp.eq.s32.totalorder %v183, %v202
        %vm242 = vcmp.eq.s32.totalorder %v183, %v206
        %vm243 = vcmp.eq.s32.totalorder %v184, %v194
        %vm244 = vcmp.eq.s32.totalorder %v184, %v198
        %vm245 = vcmp.eq.s32.totalorder %v184, %v202
        %vm246 = vcmp.eq.s32.totalorder %v184, %v206
        %vm247 = vcmp.eq.s32.totalorder %v185, %v194
        %vm248 = vcmp.eq.s32.totalorder %v185, %v198
        %vm249 = vcmp.eq.s32.totalorder %v185, %v202
        %vm250 = vcmp.eq.s32.totalorder %v185, %v206
        %vm251 = vcmp.eq.s32.totalorder %v186, %v194
        %vm252 = vcmp.eq.s32.totalorder %v186, %v198
        %vm253 = vcmp.eq.s32.totalorder %v186, %v202
        %vm254 = vcmp.eq.s32.totalorder %v186, %v206
        %vm255 = vcmp.eq.s32.totalorder %v187, %v194
        %vm256 = vcmp.eq.s32.totalorder %v187, %v198
        %vm257 = vcmp.eq.s32.totalorder %v187, %v202
        %vm258 = vcmp.eq.s32.totalorder %v187, %v206
        %vm259 = vcmp.eq.s32.totalorder %v188, %v194
        %vm260 = vcmp.eq.s32.totalorder %v188, %v198
        %vm261 = vcmp.eq.s32.totalorder %v188, %v202
        %vm262 = vcmp.eq.s32.totalorder %v188, %v206
        %vm263 = vcmp.eq.s32.totalorder %v189, %v194
        %vm264 = vcmp.eq.s32.totalorder %v189, %v198
        %vm265 = vcmp.eq.s32.totalorder %v189, %v202
        %vm266 = vcmp.eq.s32.totalorder %v189, %v206
        %vm267 = vcmp.eq.s32.totalorder %v190, %v194
        %vm268 = vcmp.eq.s32.totalorder %v190, %v198
        %vm269 = vcmp.eq.s32.totalorder %v190, %v202
        %vm270 = vcmp.eq.s32.totalorder %v190, %v206
        %v271 = vsel %vm207, 1, 0
        %v272 = vsel %vm208, 1, 0
        %v273 = vsel %vm209, 1, 0
        %v274 = vsel %vm210, 1, 0
        %v275 = vsel %vm211, 1, 0
        %v276 = vsel %vm212, 1, 0
        %v277 = vsel %vm213, 1, 0
        %v278 = vsel %vm214, 1, 0
        %v279 = vsel %vm215, 1, 0
        %v280 = vsel %vm216, 1, 0
        %v281 = vsel %vm217, 1, 0
        %v282 = vsel %vm218, 1, 0
        %v283 = vsel %vm219, 1, 0
        %v284 = vsel %vm220, 1, 0
        %v285 = vsel %vm221, 1, 0
        %v286 = vsel %vm222, 1, 0
        %v287 = vsel %vm223, 1, 0
        %v288 = vsel %vm224, 1, 0
        %v289 = vsel %vm225, 1, 0
        %v290 = vsel %vm226, 1, 0
        %v291 = vsel %vm227, 1, 0
        %v292 = vsel %vm228, 1, 0
        %v293 = vsel %vm229, 1, 0
        %v294 = vsel %vm230, 1, 0
        %v295 = vsel %vm231, 1, 0
        %v296 = vsel %vm232, 1, 0
        %v297 = vsel %vm233, 1, 0
        %v298 = vsel %vm234, 1, 0
        %v299 = vsel %vm235, 1, 0
        %v300 = vsel %vm236, 1, 0
        %v301 = vsel %vm237, 1, 0
        %v302 = vsel %vm238, 1, 0
        %v303 = vsel %vm239, 1, 0
        %v304 = vsel %vm240, 1, 0
        %v305 = vsel %vm241, 1, 0
        %v306 = vsel %vm242, 1, 0
        %v307 = vsel %vm243, 1, 0
        %v308 = vsel %vm244, 1, 0
        %v309 = vsel %vm245, 1, 0
        %v310 = vsel %vm246, 1, 0
        %v311 = vsel %vm247, 1, 0
        %v312 = vsel %vm248, 1, 0
        %v313 = vsel %vm249, 1, 0
        %v314 = vsel %vm250, 1, 0
        %v315 = vsel %vm251, 1, 0
        %v316 = vsel %vm252, 1, 0
        %v317 = vsel %vm253, 1, 0
        %v318 = vsel %vm254, 1, 0
        %v319 = vsel %vm255, 1, 0
        %v320 = vsel %vm256, 1, 0
        %v321 = vsel %vm257, 1, 0
        %v322 = vsel %vm258, 1, 0
        %v323 = vsel %vm259, 1, 0
        %v324 = vsel %vm260, 1, 0
        %v325 = vsel %vm261, 1, 0
        %v326 = vsel %vm262, 1, 0
        %v327 = vsel %vm263, 1, 0
        %v328 = vsel %vm264, 1, 0
        %v329 = vsel %vm265, 1, 0
        %v330 = vsel %vm266, 1, 0
        %v331 = vsel %vm267, 1, 0
        %v332 = vsel %vm268, 1, 0
        %v333 = vsel %vm269, 1, 0
        %v334 = vsel %vm270, 1, 0
        %v335 = vcvt.s32.f32 %v271
        %v336 = vcvt.s32.f32 %v272
        %v337 = vcvt.s32.f32 %v273
        %v338 = vcvt.s32.f32 %v274
        %v339 = vcvt.s32.f32 %v275
        %v340 = vcvt.s32.f32 %v276
        %v341 = vcvt.s32.f32 %v277
        %v342 = vcvt.s32.f32 %v278
        %v343 = vcvt.s32.f32 %v279
        %v344 = vcvt.s32.f32 %v280
        %v345 = vcvt.s32.f32 %v281
        %v346 = vcvt.s32.f32 %v282
        %v347 = vcvt.s32.f32 %v283
        %v348 = vcvt.s32.f32 %v284
        %v349 = vcvt.s32.f32 %v285
        %v350 = vcvt.s32.f32 %v286
        %v351 = vcvt.s32.f32 %v287
        %v352 = vcvt.s32.f32 %v288
        %v353 = vcvt.s32.f32 %v289
        %v354 = vcvt.s32.f32 %v290
        %v355 = vcvt.s32.f32 %v291
        %v356 = vcvt.s32.f32 %v292
        %v357 = vcvt.s32.f32 %v293
        %v358 = vcvt.s32.f32 %v294
        %v359 = vcvt.s32.f32 %v295
        %v360 = vcvt.s32.f32 %v296
        %v361 = vcvt.s32.f32 %v297
        %v362 = vcvt.s32.f32 %v298
        %v363 = vcvt.s32.f32 %v299
        %v364 = vcvt.s32.f32 %v300
        %v365 = vcvt.s32.f32 %v301
        %v366 = vcvt.s32.f32 %v302
        %v367 = vcvt.s32.f32 %v303
        %v368 = vcvt.s32.f32 %v304
        %v369 = vcvt.s32.f32 %v305
        %v370 = vcvt.s32.f32 %v306
        %v371 = vcvt.s32.f32 %v307
        %v372 = vcvt.s32.f32 %v308
        %v373 = vcvt.s32.f32 %v309
        %v374 = vcvt.s32.f32 %v310
        %v375 = vcvt.s32.f32 %v311
        %v376 = vcvt.s32.f32 %v312
        %v377 = vcvt.s32.f32 %v313
        %v378 = vcvt.s32.f32 %v314
        %v379 = vcvt.s32.f32 %v315
        %v380 = vcvt.s32.f32 %v316
        %v381 = vcvt.s32.f32 %v317
        %v382 = vcvt.s32.f32 %v318
        %v383 = vcvt.s32.f32 %v319
        %v384 = vcvt.s32.f32 %v320
        %v385 = vcvt.s32.f32 %v321
        %v386 = vcvt.s32.f32 %v322
        %v387 = vcvt.s32.f32 %v323
        %v388 = vcvt.s32.f32 %v324
        %v389 = vcvt.s32.f32 %v325
        %v390 = vcvt.s32.f32 %v326
        %v391 = vcvt.s32.f32 %v327
        %v392 = vcvt.s32.f32 %v328
        %v393 = vcvt.s32.f32 %v329
        %v394 = vcvt.s32.f32 %v330
        %v395 = vcvt.s32.f32 %v331
        %v396 = vcvt.s32.f32 %v332
        %v397 = vcvt.s32.f32 %v333
        %v398 = vcvt.s32.f32 %v334
        %399 = vmatprep.subr.mxu0 %v336
        %400 = vmatpush1.msra.mxu0 %v335
        %401 = vmatprep.subr.mxu0 %v340
        %402 = vmatpush1.msra.mxu0 %v339
        %403 = vmatprep.subr.mxu0 %v344
        %404 = vmatpush1.msra.mxu0 %v343
        %405 = vmatprep.subr.mxu0 %v348
        %406 = vmatpush1.msra.mxu0 %v347
        %407 = vmatprep.subr.mxu0 %v352
        %408 = vmatpush1.msra.mxu0 %v351
        %409 = vmatprep.subr.mxu0 %v356
        %410 = vmatpush1.msra.mxu0 %v355
        %411 = vmatprep.subr.mxu0 %v360
        %412 = vmatpush1.msra.mxu0 %v359
        %413 = vmatprep.subr.mxu0 %v364
        %414 = vmatpush1.msra.mxu0 %v363
        %415 = vmatprep.subr.mxu0 %v368
        %416 = vmatpush1.msra.mxu0 %v367
        %417 = vmatprep.subr.mxu0 %v372
        %418 = vmatpush1.msra.mxu0 %v371
        %419 = vmatprep.subr.mxu0 %v376
        %420 = vmatpush1.msra.mxu0 %v375
        %421 = vmatprep.subr.mxu0 %v380
        %422 = vmatpush1.msra.mxu0 %v379
        %423 = vmatprep.subr.mxu0 %v384
        %424 = vmatpush1.msra.mxu0 %v383
        %425 = vmatprep.subr.mxu0 %v388
        %426 = vmatpush1.msra.mxu0 %v387
        %427 = vmatprep.subr.mxu0 %v392
        %428 = vmatpush1.msra.mxu0 %v391
        %429 = vmatprep.subr.mxu0 %v396
        %430 = vmatpush1.msra.mxu0 %v395
        %431 = vmatprep.subr.mxu0 0.0
        %432 = vmatpush1.msra.mxu0 0.0
        %433 = vmatprep.subr.mxu0 0.0
        %434 = vmatpush1.msra.mxu0 0.0
        %435 = vmatprep.subr.mxu0 0.0
        %436 = vmatpush1.msra.mxu0 0.0
        %437 = vmatprep.subr.mxu0 0.0
        %438 = vmatpush1.msra.mxu0 0.0
        %439 = vmatprep.subr.mxu0 0.0
        %440 = vmatpush1.msra.mxu0 0.0
        %441 = vmatprep.subr.mxu0 0.0
        %442 = vmatpush1.msra.mxu0 0.0
        %443 = vmatprep.subr.mxu0 0.0
        %444 = vmatpush1.msra.mxu0 0.0
        %445 = vmatprep.subr.mxu0 0.0
        %446 = vmatpush1.msra.mxu0 0.0
        %447 = vmatprep.subr.mxu0 0.0
        %448 = vmatpush1.msra.mxu0 0.0
        %449 = vmatprep.subr.mxu0 0.0
        %450 = vmatpush1.msra.mxu0 0.0
        %451 = vmatprep.subr.mxu0 0.0
        %452 = vmatpush1.msra.mxu0 0.0
        %453 = vmatprep.subr.mxu0 0.0
        %454 = vmatpush1.msra.mxu0 0.0
        %455 = vmatprep.subr.mxu0 0.0
        %456 = vmatpush1.msra.mxu0 0.0
        %457 = vmatprep.subr.mxu0 0.0
        %458 = vmatpush1.msra.mxu0 0.0
        %459 = vmatprep.subr.mxu0 0.0
        %460 = vmatpush1.msra.mxu0 0.0
        %461 = vmatprep.subr.mxu0 0.0
        %462 = vmatpush1.msra.mxu0 0.0
        %463 = vmatprep.mubr.f32.mxu0 0.0
        %464 = vmatmul.mubr.f32.gmra.mrb[0].mxu0 %v172
        %v465 = vpop.f32.mrb[0].mxu0
        %v466 = vadd.f32 0.0, %v465
        %v467 = vpop.f32.mrb[0].mxu0
        %v468 = vadd.f32 0.0, %v467
        %469 = vdwg.mxu0
        %470 = vmatprep.subr.mxu0 %v338
        %471 = vmatpush1.msra.mxu0 %v337
        %472 = vmatprep.subr.mxu0 %v342
        %473 = vmatpush1.msra.mxu0 %v341
        %474 = vmatprep.subr.mxu0 %v346
        %475 = vmatpush1.msra.mxu0 %v345
        %476 = vmatprep.subr.mxu0 %v350
        %477 = vmatpush1.msra.mxu0 %v349
        %478 = vmatprep.subr.mxu0 %v354
        %479 = vmatpush1.msra.mxu0 %v353
        %480 = vmatprep.subr.mxu0 %v358
        %481 = vmatpush1.msra.mxu0 %v357
        %482 = vmatprep.subr.mxu0 %v362
        %483 = vmatpush1.msra.mxu0 %v361
        %484 = vmatprep.subr.mxu0 %v366
        %485 = vmatpush1.msra.mxu0 %v365
        %486 = vmatprep.subr.mxu0 %v370
        %487 = vmatpush1.msra.mxu0 %v369
        %488 = vmatprep.subr.mxu0 %v374
        %489 = vmatpush1.msra.mxu0 %v373
        %490 = vmatprep.subr.mxu0 %v378
        %491 = vmatpush1.msra.mxu0 %v377
        %492 = vmatprep.subr.mxu0 %v382
        %493 = vmatpush1.msra.mxu0 %v381
        %494 = vmatprep.subr.mxu0 %v386
        %495 = vmatpush1.msra.mxu0 %v385
        %496 = vmatprep.subr.mxu0 %v390
        %497 = vmatpush1.msra.mxu0 %v389
        %498 = vmatprep.subr.mxu0 %v394
        %499 = vmatpush1.msra.mxu0 %v393
        %500 = vmatprep.subr.mxu0 %v398
        %501 = vmatpush1.msra.mxu0 %v397
        %502 = vmatprep.subr.mxu0 0.0
        %503 = vmatpush1.msra.mxu0 0.0
        %504 = vmatprep.subr.mxu0 0.0
        %505 = vmatpush1.msra.mxu0 0.0
        %506 = vmatprep.subr.mxu0 0.0
        %507 = vmatpush1.msra.mxu0 0.0
        %508 = vmatprep.subr.mxu0 0.0
        %509 = vmatpush1.msra.mxu0 0.0
        %510 = vmatprep.subr.mxu0 0.0
        %511 = vmatpush1.msra.mxu0 0.0
        %512 = vmatprep.subr.mxu0 0.0
        %513 = vmatpush1.msra.mxu0 0.0
        %514 = vmatprep.subr.mxu0 0.0
        %515 = vmatpush1.msra.mxu0 0.0
        %516 = vmatprep.subr.mxu0 0.0
        %517 = vmatpush1.msra.mxu0 0.0
        %518 = vmatprep.subr.mxu0 0.0
        %519 = vmatpush1.msra.mxu0 0.0
        %520 = vmatprep.subr.mxu0 0.0
        %521 = vmatpush1.msra.mxu0 0.0
        %522 = vmatprep.subr.mxu0 0.0
        %523 = vmatpush1.msra.mxu0 0.0
        %524 = vmatprep.subr.mxu0 0.0
        %525 = vmatpush1.msra.mxu0 0.0
        %526 = vmatprep.subr.mxu0 0.0
        %527 = vmatpush1.msra.mxu0 0.0
        %528 = vmatprep.subr.mxu0 0.0
        %529 = vmatpush1.msra.mxu0 0.0
        %530 = vmatprep.subr.mxu0 0.0
        %531 = vmatpush1.msra.mxu0 0.0
        %532 = vmatprep.subr.mxu0 0.0
        %533 = vmatpush1.msra.mxu0 0.0
        %534 = vmatprep.mubr.f32.mxu0 0.0
        %535 = vmatmul.mubr.f32.gmra.mrb[0].mxu0 %v172
        %v536 = vpop.f32.mrb[0].mxu0
        %v537 = vadd.f32 0.0, %v536
        %v538 = vpop.f32.mrb[0].mxu0
        %v539 = vadd.f32 0.0, %v538
        %540 = vdwg.mxu0
        %541 = vst [vmem:[%s171] sm:$0xff] %v466
        %542 = vst [vmem:[%s171 + $0x8] sm:$0xff] %v468
        %543 = vst [vmem:[%s171 + $0x10] sm:$0xff] %v537
        %544 = vst [vmem:[%s171 + $0x18] sm:$0xff] %v539
        %s545 = sand.u32 %s75, 1
        %s546 = scalar_lea.sflag [#allocation4], %s545
        %s547 = sand.u32 %s75, 1
        %s548 = smul.addr %s547, 32
        %s549 = scalar_lea.vmem [#allocation7], %s548
        // Predicated region
        $region37: #{tpu_custom_call.1} parent=27 // pred_check
          %p550 = pneg %p85
        $region38: #{tpu_custom_call.1} parent=27 // pred_check_branch
          %552 = sbr.rel (%p550) target = $region40
        $region39: #{tpu_custom_call.1} parent=27 // pred_region
          %s554 = ssub.s32 512, 512
          %555 = vsyncadd %s546, %s554
          %s556 = smul.addr %s20, 4
          %s557 = smul.addr %s556, 128
          %s558 = scalar_lea.hbm %s2, %s557
          %s560 = sshll.u32 %s549, 4
          %s561 = int_to_ptr.vmem [resolvable:$true] %s560
          %563 = dma.vmem_to_hbm [thread:$0]  %s561, 512, %s558, %s546
        $region40: #{tpu_custom_call.1} parent=27 // pred_fallthru
          _
      $region28: #{tpu_custom_call.1} parent=5 // pred_fallthru
        _
      %p564 = scmp.le.s32.totalorder 2, %s15
      // Predicated region
      $region41: #{tpu_custom_call.1} parent=5 // pred_check
        %p565 = pneg %p564
      $region42: #{tpu_custom_call.1} parent=5 // pred_check_branch
        %567 = sbr.rel (%p565) target = $region44
      $region43: #{tpu_custom_call.1} parent=5 // pred_region
        %s568 = ssub.s32 %s15, 2
        // Predicated region
        $region45: #{tpu_custom_call.1} parent=43 // pred_check
          %p569 = pneg %p91
        $region46: #{tpu_custom_call.1} parent=43 // pred_check_branch
          %571 = sbr.rel (%p569) target = $region48
        $region47: #{tpu_custom_call.1} parent=43 // pred_region
          %s572 = sand.u32 %s76, 1
          %s573 = scalar_lea.sflag [#allocation4], %s572
          %s574 = sand.u32 %s76, 1
          %s575 = smul.addr %s574, 32
          %s576 = scalar_lea.vmem [#allocation7], %s575
          %577 = dma.done %s573, 512
        $region48: #{tpu_custom_call.1} parent=43 // pred_fallthru
          _
      $region44: #{tpu_custom_call.1} parent=5 // pred_fallthru
        _
    $region6: #{tpu_custom_call.1} parent=1 // loop_footer
      %s19 = sadd.s32 1, %s15
    $region7: #{tpu_custom_call.1} parent=1 // loop_footer_branch
      %14 = sbr.rel target = $region3
    $region8: #{tpu_custom_call.1} parent=1 // loop_exit
      _
    %578 = vsyncpa [#allocation3], 1
    %s579 = scalar_lea.sflag [#allocation3], 1
    %580 = vsyncpa %s579, 1
    %581 = vsyncpa [#allocation6], 1
    %s582 = scalar_lea.sflag [#allocation6], 1
    %583 = vsyncpa %s582, 1
    %584 = vsyncpa [#allocation4], 1
    %s585 = scalar_lea.sflag [#allocation4], 1
    %586 = vsyncpa %s585, 1

</llo_original>
